<compile_context>
chip_gen: v7x
topology: tpu7x:2x2x1
jax: 0.10.0
libtpu: 0.0.40
codegen_flags: <defaults>
</compile_context>

<pallas_src>
import functools
import math

import jax
import jax.numpy as jnp
from jax.experimental import pallas as pl
from jax.experimental.pallas import tpu as pltpu

BN_EPS = 1e-3          # nn.BatchNorm1d(..., eps=0.001)
LN_EPS = 1e-5          # nn.LayerNorm default eps
LANE = 128             # TPU lane width: keep output feature dims lane-dense

_VMEM_CAP = 48 * 1024 * 1024      # stay under v7x's 64 MiB VMEM per TC
_FUSE_BUDGET = 24 * 1024 * 1024   # fuse whole stack only below this footprint


def _round_up(n, m):
    return ((n + m - 1) // m) * m


def _pick_tile_n(d_out_pad, target=512):
    """Largest multiple of 128 <= target that divides d_out_pad."""
    best = LANE
    t = LANE
    while t <= min(target, d_out_pad):
        if d_out_pad % t == 0:
            best = t
        t += LANE
    return best


def _vmem_limit(estimate_bytes):
    return int(min(_VMEM_CAP, max(32 * 1024 * 1024, 2 * estimate_bytes)))


def _layer_epilogue(acc, bias, gamma, beta, *, use_batch_norm, use_layer_norm,
                    use_activation, d_valid):
    """Linear-bias / BatchNorm1d (batch stats) -> optional LayerNorm -> ReLU.

    `acc` is the f32 matmul result, [B, Dp]; feature columns >= d_valid are
    zero (zero-padded weight columns, zero bias/beta padding).
    """
    if use_batch_norm:
        # Linear bias is exactly cancelled by the mean subtraction -> dropped.
        mean = jnp.mean(acc, axis=0, keepdims=True)
        d = acc - mean                                    # reused: var + norm
        var = jnp.mean(d * d, axis=0, keepdims=True)
        scale = gamma * jax.lax.rsqrt(var + BN_EPS)       # fold gamma, [1, Dp]
        h = d * scale + beta
    else:
        h = acc + bias
    if use_layer_norm:
        # nn.LayerNorm(n_out, elementwise_affine=False) over the d_valid real
        # features; padded columns are zero on entry and masked out only when
        # padding exists (lane-dense n_out needs no mask at all).
        dp = h.shape[-1]
        inv_n = jnp.float32(1.0 / d_valid)
        mu = jnp.sum(h, axis=-1, keepdims=True) * inv_n
        if d_valid == dp:
            cen = h - mu
        else:
            col = jax.lax.broadcasted_iota(jnp.int32, (1, dp), 1)
            cen = jnp.where(col < d_valid, h - mu, 0.0)
        v = jnp.sum(cen * cen, axis=-1, keepdims=True) * inv_n
        h = cen * jax.lax.rsqrt(v + LN_EPS)
    if use_activation:
        h = jnp.maximum(h, 0.0)                           # ReLU
    return h


# --------------------------------------------------------------------------
# Fused whole-stack kernel: all layers in one pallas_call, weights resident.
# --------------------------------------------------------------------------
def _fused_stack_kernel(*refs, layer_meta, has_cat, use_batch_norm,
                        use_layer_norm, use_activation):
    o_ref = refs[-1]
    it = iter(refs[:-1])
    x_ref = next(it)
    oh = None
    if has_cat:
        oh = next(it)[...].astype(jnp.bfloat16)           # cast once, reused
    h = x_ref[...].astype(jnp.float32)
    for inject, d_valid in layer_meta:
        wx_ref = next(it)
        wcat_ref = next(it) if inject else None
        p_ref = next(it)
        # MXU in bf16, f32 accumulation.
        acc = jnp.dot(h.astype(jnp.bfloat16), wx_ref[...],
                      preferred_element_type=jnp.float32)
        if wcat_ref is not None:
            acc = acc + jnp.dot(oh, wcat_ref[...],
                                preferred_element_type=jnp.float32)
        params = p_ref[...]                               # [3, Dp]: bias/gamma/beta
        h = _layer_epilogue(acc, params[0:1, :], params[1:2, :], params[2:3, :],
                            use_batch_norm=use_batch_norm,
                            use_layer_norm=use_layer_norm,
                            use_activation=use_activation,
                            d_valid=d_valid)
    o_ref[...] = h.astype(o_ref.dtype)


def fc_stack_fused(x, oh, layers, layer_meta, *, use_batch_norm,
                   use_layer_norm, use_activation):
    B = x.shape[0]
    has_cat = oh is not None
    inputs = [x]
    in_specs = [pl.BlockSpec(x.shape, lambda i: (0, 0))]
    flops = 0
    bytes_acc = x.size * x.dtype.itemsize
    if has_cat:
        inputs.append(oh)
        in_specs.append(pl.BlockSpec(oh.shape, lambda i: (0, 0)))
        bytes_acc += oh.size * oh.dtype.itemsize
    for p, (inject, _) in zip(layers, layer_meta):
        wx = p["wx"]
        inputs.append(wx)
        in_specs.append(pl.BlockSpec(wx.shape, lambda i: (0, 0)))
        flops += 2 * B * wx.shape[0] * wx.shape[1]
        bytes_acc += wx.size * wx.dtype.itemsize
        if inject:
            wc = p["wcat"]
            inputs.append(wc)
            in_specs.append(pl.BlockSpec(wc.shape, lambda i: (0, 0)))
            flops += 2 * B * wc.shape[0] * wc.shape[1]
            bytes_acc += wc.size * wc.dtype.itemsize
        pr = p["params"]
        inputs.append(pr)
        in_specs.append(pl.BlockSpec(pr.shape, lambda i: (0, 0)))
        bytes_acc += pr.size * pr.dtype.itemsize
    d_out_pad = layers[-1]["wx"].shape[1]
    bytes_acc += B * d_out_pad * 4
    max_w = max(p["wx"].shape[1] for p in layers)
    vmem_est = bytes_acc + 3 * B * max_w * 4

    kernel = functools.partial(
        _fused_stack_kernel, layer_meta=tuple(layer_meta), has_cat=has_cat,
        use_batch_norm=use_batch_norm, use_layer_norm=use_layer_norm,
        use_activation=use_activation)

    return pl.pallas_call(
        kernel,
        out_shape=jax.ShapeDtypeStruct((B, d_out_pad), jnp.float32),
        grid=(1,),
        in_specs=in_specs,
        out_specs=pl.BlockSpec((B, d_out_pad), lambda i: (0, 0)),
        compiler_params=pltpu.CompilerParams(
            dimension_semantics=("arbitrary",),
            vmem_limit_bytes=_vmem_limit(vmem_est)),
        cost_estimate=pl.CostEstimate(flops=int(flops),
                                      transcendentals=int(B * len(layer_meta)),
                                      bytes_accessed=int(bytes_acc)),
    )(*inputs)


# --------------------------------------------------------------------------
# Fallback: one layer per pallas_call, tiled over the output-feature axis.
# --------------------------------------------------------------------------
def _tiled_layer_kernel(*refs, inject, use_batch_norm, use_layer_norm,
                        use_activation, d_valid):
    if inject:
        x_ref, wx_ref, p_ref, oh_ref, wcat_ref, o_ref = refs
    else:
        x_ref, wx_ref, p_ref, o_ref = refs
        oh_ref = wcat_ref = None
    acc = jnp.dot(x_ref[...].astype(jnp.bfloat16), wx_ref[...],
                  preferred_element_type=jnp.float32)
    if inject:
        acc = acc + jnp.dot(oh_ref[...].astype(jnp.bfloat16), wcat_ref[...],
                            preferred_element_type=jnp.float32)
    params = p_ref[...]
    h = _layer_epilogue(acc, params[0:1, :], params[1:2, :], params[2:3, :],
                        use_batch_norm=use_batch_norm,
                        use_layer_norm=use_layer_norm,
                        use_activation=use_activation, d_valid=d_valid)
    o_ref[...] = h.astype(o_ref.dtype)


def fc_layer_tiled(x, oh, wx, wcat, params, *, inject, use_batch_norm,
                   use_layer_norm, use_activation, d_valid,
                   out_dtype=jnp.float32, target_tile_n=512):
    B, d_in = x.shape
    d_out_pad = wx.shape[1]
    # LayerNorm reduces over the full feature row -> keep it in one block.
    tn = d_out_pad if use_layer_norm else _pick_tile_n(d_out_pad, target_tile_n)
    grid = (d_out_pad // tn,)

    inputs = [x, wx, params]
    in_specs = [
        pl.BlockSpec((B, d_in), lambda j: (0, 0)),       # x resident
        pl.BlockSpec((d_in, tn), lambda j: (0, j)),      # W^T tiled over Dout
        pl.BlockSpec((3, tn), lambda j: (0, j)),         # packed bias/gamma/beta
    ]
    if inject:
        inputs += [oh, wcat]
        in_specs += [
            pl.BlockSpec(oh.shape, lambda j: (0, 0)),    # one-hot resident
            pl.BlockSpec((wcat.shape[0], tn), lambda j: (0, j)),
        ]

    flops = 2 * B * d_in * d_out_pad
    bytes_acc = (x.size * x.dtype.itemsize + wx.size * wx.dtype.itemsize
                 + params.size * params.dtype.itemsize
                 + B * d_out_pad * jnp.dtype(out_dtype).itemsize)
    if inject:
        flops += 2 * B * wcat.shape[0] * d_out_pad
        bytes_acc += oh.size * oh.dtype.itemsize + wcat.size * wcat.dtype.itemsize

    vmem_est = (x.size * x.dtype.itemsize
                + (oh.size * oh.dtype.itemsize if inject else 0)
                + 2 * (d_in * tn * 2 + 3 * tn * 4
                       + (wcat.shape[0] * tn * 2 if inject else 0)
                       + B * tn * jnp.dtype(out_dtype).itemsize)
                + 3 * B * tn * 4)

    kernel = functools.partial(
        _tiled_layer_kernel, inject=inject, use_batch_norm=use_batch_norm,
        use_layer_norm=use_layer_norm, use_activation=use_activation,
        d_valid=d_valid)

    return pl.pallas_call(
        kernel,
        out_shape=jax.ShapeDtypeStruct((B, d_out_pad), out_dtype),
        grid=grid,
        in_specs=in_specs,
        out_specs=pl.BlockSpec((B, tn), lambda j: (0, j)),
        compiler_params=pltpu.CompilerParams(
            # Dout tiles are independent (BN stats are per-feature) -> shard
            # across TensorCores on multi-TC chips.
            dimension_semantics=("parallel",),
            vmem_limit_bytes=_vmem_limit(vmem_est)),
        cost_estimate=pl.CostEstimate(flops=int(flops), transcendentals=int(B),
                                      bytes_accessed=int(bytes_acc)),
    )(*inputs)


# --------------------------------------------------------------------------
# Module wrapper
# --------------------------------------------------------------------------
class FCLayersPallas:
    """JAX/Pallas re-implementation of cell2fate FCLayers (2-D inputs)."""

    def __init__(self, n_in, n_out, n_cat_list=None, n_layers=1, n_hidden=128,
                 dropout_rate=0.1, use_batch_norm=True, use_layer_norm=False,
                 use_activation=True, bias=True, inject_covariates=True,
                 fuse="auto", key=None):
        self.inject_covariates = inject_covariates
        self.use_batch_norm = use_batch_norm
        self.use_layer_norm = use_layer_norm
        self.use_activation = use_activation
        self.dropout_rate = dropout_rate   # identity at inference (see TODO)
        self.n_out = n_out
        self.fuse = fuse

        layers_dim = [n_in] + (n_layers - 1) * [n_hidden] + [n_out]
        self._layers_dim = layers_dim
        if n_cat_list is not None:
            self.n_cat_list = [n_cat if n_cat > 1 else 0 for n_cat in n_cat_list]
        else:
            self.n_cat_list = []
        cat_dim = sum(self.n_cat_list)
        self.cat_dim = cat_dim

        if key is None:
            key = jax.random.PRNGKey(0)

        self.layers = []
        self.layer_meta = []            # (inject covariates?, valid d_out)
        prev_pad = n_in                 # kernel-visible input width of layer i
        for i, (d_in, d_out) in enumerate(zip(layers_dim[:-1], layers_dim[1:])):
            inject = self.inject_into_layer(i) and cat_dim > 0
            d_out_pad = _round_up(d_out, LANE)         # lane-dense outputs
            d_in_eff = d_in + cat_dim * int(self.inject_into_layer(i))
            bound = 1.0 / math.sqrt(d_in_eff)          # torch nn.Linear init
            key, kw, kc, kb = jax.random.split(key, 4)

            # W^T split: x part [prev_pad, d_out_pad]; padded rows/cols = 0.
            wx = jnp.zeros((prev_pad, d_out_pad), jnp.float32)
            wx = wx.at[:d_in, :d_out].set(
                jax.random.uniform(kw, (d_in, d_out), jnp.float32,
                                   minval=-bound, maxval=bound))
            entry = {"wx": wx.astype(jnp.bfloat16)}    # bf16 MXU operand
            if inject:
                wc = jnp.zeros((cat_dim, d_out_pad), jnp.float32)
                wc = wc.at[:, :d_out].set(
                    jax.random.uniform(kc, (cat_dim, d_out), jnp.float32,
                                       minval=-bound, maxval=bound))
                entry["wcat"] = wc.astype(jnp.bfloat16)

            # Packed per-layer params: rows = (bias, gamma, beta), f32.
            bias_row = jnp.zeros((d_out_pad,), jnp.float32)
            if bias:
                bias_row = bias_row.at[:d_out].set(
                    jax.random.uniform(kb, (d_out,), jnp.float32,
                                       minval=-bound, maxval=bound))
            gamma_row = jnp.ones((d_out_pad,), jnp.float32)
            beta_row = jnp.zeros((d_out_pad,), jnp.float32)
            entry["params"] = jnp.stack([bias_row, gamma_row, beta_row], axis=0)

            self.layers.append(entry)
            self.layer_meta.append((inject, d_out))
            prev_pad = d_out_pad

    def inject_into_layer(self, layer_num) -> bool:
        return layer_num == 0 or (layer_num > 0 and self.inject_covariates)

    def _one_hot_block(self, cat_list):
        """Build the [B, cat_dim] one-hot covariate block once (not per layer)."""
        if len(self.n_cat_list) > len(cat_list):
            raise ValueError("nb. categorical args provided doesn't match init. params.")
        ohs = []
        for n_cat, cat in zip(self.n_cat_list, cat_list):
            if n_cat and cat is None:
                raise ValueError("cat not provided while n_cat != 0 in init. params.")
            if n_cat > 1:
                if cat.shape[-1] != n_cat:
                    oh = jax.nn.one_hot(cat.reshape(cat.shape[0]).astype(jnp.int32),
                                        n_cat, dtype=jnp.float32)
                else:
                    oh = cat.astype(jnp.float32)
                ohs.append(oh)
        if not ohs:
            return None
        return ohs[0] if len(ohs) == 1 else jnp.concatenate(ohs, axis=-1)

    def _fused_vmem_bytes(self, batch):
        total = batch * self._layers_dim[0] * 4
        if self.cat_dim:
            total += batch * self.cat_dim * 4
        max_w = 0
        for p in self.layers:
            total += p["wx"].size * p["wx"].dtype.itemsize
            if "wcat" in p:
                total += p["wcat"].size * p["wcat"].dtype.itemsize
            total += p["params"].size * 4
            max_w = max(max_w, p["wx"].shape[1])
        total += batch * self.layers[-1]["wx"].shape[1] * 4   # output
        total += 3 * batch * max_w * 4                        # intermediates
        return total

    def __call__(self, x, *cat_list, fuse=None):
        oh = self._one_hot_block(cat_list)
        mode = self.fuse if fuse is None else fuse
        if mode == "auto":
            mode = self._fused_vmem_bytes(x.shape[0]) <= _FUSE_BUDGET
        if mode:
            out = fc_stack_fused(x, oh, self.layers, self.layer_meta,
                                 use_batch_norm=self.use_batch_norm,
                                 use_layer_norm=self.use_layer_norm,
                                 use_activation=self.use_activation)
        else:
            h = x
            n = len(self.layers)
            for i, p in enumerate(self.layers):
                inject, d_valid = self.layer_meta[i]
                h = fc_layer_tiled(
                    h, oh, p["wx"], p.get("wcat"), p["params"],
                    inject=inject,
                    use_batch_norm=self.use_batch_norm,
                    use_layer_norm=self.use_layer_norm,
                    use_activation=self.use_activation,
                    d_valid=d_valid,
                    # bf16 intermediates halve HBM traffic; final layer f32.
                    out_dtype=jnp.float32 if i == n - 1 else jnp.bfloat16)
            out = h
        return out[:, :self.n_out]

    # Pure-JAX reference for validation (mirrors the kernel's bf16 operands).
    def reference(self, x, *cat_list):
        oh = self._one_hot_block(cat_list)
        h = x
        for i, p in enumerate(self.layers):
            inject, d_out = self.layer_meta[i]
            d_in = self._layers_dim[i]
            wx = p["wx"][:d_in, :d_out].astype(jnp.float32)
            hb = h.astype(jnp.bfloat16).astype(jnp.float32)
            acc = hb @ wx
            if inject:
                wc = p["wcat"][:, :d_out].astype(jnp.float32)
                acc = acc + oh.astype(jnp.bfloat16).astype(jnp.float32) @ wc
            bias = p["params"][0, :d_out]
            gamma = p["params"][1, :d_out]
            beta = p["params"][2, :d_out]
            if self.use_batch_norm:
                # bias cancels under the mean subtraction (exactly as in torch).
                mean = jnp.mean(acc, axis=0, keepdims=True)
                var = jnp.mean((acc - mean) ** 2, axis=0, keepdims=True)
                h = (acc - mean) * jax.lax.rsqrt(var + BN_EPS) * gamma + beta
            else:
                h = acc + bias
            if self.use_layer_norm:
                mu = jnp.mean(h, axis=-1, keepdims=True)
                v = jnp.mean((h - mu) ** 2, axis=-1, keepdims=True)
                h = (h - mu) * jax.lax.rsqrt(v + LN_EPS)
            if self.use_activation:
                h = jnp.maximum(h, 0.0)
        return h


if __name__ == "__main__":
    key = jax.random.PRNGKey(0)
    k_x, k_c0, k_c1, k_p1, k_p2 = jax.random.split(key, 5)

    batch, n_in, n_hidden, n_out = 8, 16, 32, 32
    n_cat_list = [3, 2]

    x = jax.random.normal(k_x, (batch, n_in), jnp.float32)
    cat0 = jax.random.randint(k_c0, (batch, 1), 0, n_cat_list[0])
    cat1 = jax.random.randint(k_c1, (batch, 1), 0, n_cat_list[1])

    # Config A: default FCLayers (BatchNorm + ReLU, covariate injection).
    model_a = FCLayersPallas(n_in=n_in, n_out=n_out, n_cat_list=n_cat_list,
                             n_layers=2, n_hidden=n_hidden, dropout_rate=0.1,
                             use_batch_norm=True, use_layer_norm=False,
                             use_activation=True, bias=True,
                             inject_covariates=True, key=k_p1)
    out_fused = jax.block_until_ready(model_a(x, cat0, cat1, fuse=True))
    out_tiled = jax.block_until_ready(model_a(x, cat0, cat1, fuse=False))
    ref_a = model_a.reference(x, cat0, cat1)
    assert out_fused.shape == (batch, n_out), out_fused.shape
    assert out_tiled.shape == (batch, n_out), out_tiled.shape
    assert jnp.allclose(out_fused, ref_a, atol=1e-2, rtol=1e-2), "fused mismatch"
    assert jnp.allclose(out_tiled, ref_a, atol=1e-2, rtol=1e-2), "tiled mismatch"

    # Config B: LayerNorm path (no BatchNorm, no covariates, bias kept).
    model_b = FCLayersPallas(n_in=n_in, n_out=n_out, n_layers=2,
                             n_hidden=n_hidden, use_batch_norm=False,
                             use_layer_norm=True, use_activation=True,
                             bias=True, key=k_p2)
    out_b = jax.block_until_ready(model_b(x))
    ref_b = model_b.reference(x)
    assert out_b.shape == (batch, n_out), out_b.shape
    assert jnp.allclose(out_b, ref_b, atol=1e-2, rtol=1e-2), "layernorm mismatch"

    print("KERNEL_OK")
</pallas_src>

<mosaic_0001>
module attributes {stable_mosaic.version = 11 : i64} {
  func.func @_fused_stack_kernel(%arg0: i32, %arg1: memref<8x16xf32, #tpu.memory_space<vmem>>, %arg2: memref<8x5xf32, #tpu.memory_space<vmem>>, %arg3: memref<16x128xbf16, #tpu.memory_space<vmem>>, %arg4: memref<5x128xbf16, #tpu.memory_space<vmem>>, %arg5: memref<3x128xf32, #tpu.memory_space<vmem>>, %arg6: memref<128x128xbf16, #tpu.memory_space<vmem>>, %arg7: memref<5x128xbf16, #tpu.memory_space<vmem>>, %arg8: memref<3x128xf32, #tpu.memory_space<vmem>>, %arg9: memref<8x128xf32, #tpu.memory_space<vmem>>) attributes {dimension_semantics = [#tpu.dimension_semantics<arbitrary>], iteration_bounds = array<i64: 1>, scalar_prefetch = 0 : i64, scratch_operands = 0 : i64, tpu.core_type = #tpu.core_type<tc>, window_params = [{pipeline_mode = #tpu.pipeline_mode<synchronous>, transform_indices = @transform_0, window_bounds = array<i64: 8, 16>}, {pipeline_mode = #tpu.pipeline_mode<synchronous>, transform_indices = @transform_1, window_bounds = array<i64: 8, 5>}, {pipeline_mode = #tpu.pipeline_mode<synchronous>, transform_indices = @transform_2, window_bounds = array<i64: 16, 128>}, {pipeline_mode = #tpu.pipeline_mode<synchronous>, transform_indices = @transform_3, window_bounds = array<i64: 5, 128>}, {pipeline_mode = #tpu.pipeline_mode<synchronous>, transform_indices = @transform_4, window_bounds = array<i64: 3, 128>}, {pipeline_mode = #tpu.pipeline_mode<synchronous>, transform_indices = @transform_5, window_bounds = array<i64: 128, 128>}, {pipeline_mode = #tpu.pipeline_mode<synchronous>, transform_indices = @transform_6, window_bounds = array<i64: 5, 128>}, {pipeline_mode = #tpu.pipeline_mode<synchronous>, transform_indices = @transform_7, window_bounds = array<i64: 3, 128>}, {pipeline_mode = #tpu.pipeline_mode<synchronous>, transform_indices = @transform_8, window_bounds = array<i64: 8, 128>}]} {
    %c0 = arith.constant 0 : index
    %c0_0 = arith.constant 0 : index
    %0 = vector.load %arg2[%c0, %c0_0] : memref<8x5xf32, #tpu.memory_space<vmem>>, vector<8x5xf32>
    %1 = arith.truncf %0 : vector<8x5xf32> to vector<8x5xbf16>
    %c0_1 = arith.constant 0 : index
    %c0_2 = arith.constant 0 : index
    %2 = vector.load %arg1[%c0_1, %c0_2] : memref<8x16xf32, #tpu.memory_space<vmem>>, vector<8x16xf32>
    %3 = arith.truncf %2 : vector<8x16xf32> to vector<8x16xbf16>
    %c0_3 = arith.constant 0 : index
    %c0_4 = arith.constant 0 : index
    %4 = vector.load %arg3[%c0_3, %c0_4] : memref<16x128xbf16, #tpu.memory_space<vmem>>, vector<16x128xbf16>
    %cst = arith.constant dense<0.000000e+00> : vector<8x128xf32>
    %5 = tpu.matmul %3, %4, %cst {dimension_numbers = #tpu.dot_dimension_numbers<[1], [0], [0], [1], [0, 0, 1, 1], [], []>} : vector<8x16xbf16>, vector<16x128xbf16>, vector<8x128xf32> -> vector<8x128xf32>
    %c0_5 = arith.constant 0 : index
    %c0_6 = arith.constant 0 : index
    %6 = vector.load %arg4[%c0_5, %c0_6] : memref<5x128xbf16, #tpu.memory_space<vmem>>, vector<5x128xbf16>
    %cst_7 = arith.constant dense<0.000000e+00> : vector<8x128xf32>
    %7 = tpu.matmul %1, %6, %cst_7 {dimension_numbers = #tpu.dot_dimension_numbers<[1], [0], [0], [1], [0, 0, 1, 1], [], []>} : vector<8x5xbf16>, vector<5x128xbf16>, vector<8x128xf32> -> vector<8x128xf32>
    %8 = arith.addf %5, %7 : vector<8x128xf32>
    %c0_8 = arith.constant 0 : index
    %c0_9 = arith.constant 0 : index
    %9 = vector.load %arg5[%c0_8, %c0_9] : memref<3x128xf32, #tpu.memory_space<vmem>>, vector<3x128xf32>
    %10 = vector.extract_strided_slice %9 {offsets = [1, 0], sizes = [1, 128], strides = [1, 1]} : vector<3x128xf32> to vector<1x128xf32>
    %11 = vector.extract_strided_slice %9 {offsets = [2, 0], sizes = [1, 128], strides = [1, 1]} : vector<3x128xf32> to vector<1x128xf32>
    %cst_10 = arith.constant dense<0.000000e+00> : vector<128xf32>
    %12 = vector.multi_reduction <add>, %8, %cst_10 [0] : vector<8x128xf32> to vector<128xf32>
    %13 = vector.shape_cast %12 : vector<128xf32> to vector<1x128xf32>
    %cst_11 = arith.constant 8.000000e+00 : f32
    %14 = vector.broadcast %cst_11 : f32 to vector<1x128xf32>
    %15 = arith.divf %13, %14 : vector<1x128xf32>
    %16 = vector.broadcast %15 : vector<1x128xf32> to vector<8x128xf32>
    %17 = arith.subf %8, %16 : vector<8x128xf32>
    %18 = arith.mulf %17, %17 : vector<8x128xf32>
    %cst_12 = arith.constant dense<0.000000e+00> : vector<128xf32>
    %19 = vector.multi_reduction <add>, %18, %cst_12 [0] : vector<8x128xf32> to vector<128xf32>
    %20 = vector.shape_cast %19 : vector<128xf32> to vector<1x128xf32>
    %cst_13 = arith.constant 8.000000e+00 : f32
    %21 = vector.broadcast %cst_13 : f32 to vector<1x128xf32>
    %22 = arith.divf %20, %21 : vector<1x128xf32>
    %cst_14 = arith.constant 1.000000e-03 : f32
    %23 = vector.broadcast %cst_14 : f32 to vector<1x128xf32>
    %24 = arith.addf %22, %23 : vector<1x128xf32>
    %25 = math.rsqrt %24 : vector<1x128xf32>
    %26 = arith.mulf %10, %25 : vector<1x128xf32>
    %27 = vector.broadcast %26 : vector<1x128xf32> to vector<8x128xf32>
    %28 = arith.mulf %17, %27 : vector<8x128xf32>
    %29 = vector.broadcast %11 : vector<1x128xf32> to vector<8x128xf32>
    %30 = arith.addf %28, %29 : vector<8x128xf32>
    %cst_15 = arith.constant 0.000000e+00 : f32
    %31 = vector.broadcast %cst_15 : f32 to vector<8x128xf32>
    %32 = arith.maximumf %30, %31 : vector<8x128xf32>
    %33 = arith.truncf %32 : vector<8x128xf32> to vector<8x128xbf16>
    %c0_16 = arith.constant 0 : index
    %c0_17 = arith.constant 0 : index
    %34 = vector.load %arg6[%c0_16, %c0_17] : memref<128x128xbf16, #tpu.memory_space<vmem>>, vector<128x128xbf16>
    %cst_18 = arith.constant dense<0.000000e+00> : vector<8x128xf32>
    %35 = tpu.matmul %33, %34, %cst_18 {dimension_numbers = #tpu.dot_dimension_numbers<[1], [0], [0], [1], [0, 0, 1, 1], [], []>} : vector<8x128xbf16>, vector<128x128xbf16>, vector<8x128xf32> -> vector<8x128xf32>
    %c0_19 = arith.constant 0 : index
    %c0_20 = arith.constant 0 : index
    %36 = vector.load %arg7[%c0_19, %c0_20] : memref<5x128xbf16, #tpu.memory_space<vmem>>, vector<5x128xbf16>
    %cst_21 = arith.constant dense<0.000000e+00> : vector<8x128xf32>
    %37 = tpu.matmul %1, %36, %cst_21 {dimension_numbers = #tpu.dot_dimension_numbers<[1], [0], [0], [1], [0, 0, 1, 1], [], []>} : vector<8x5xbf16>, vector<5x128xbf16>, vector<8x128xf32> -> vector<8x128xf32>
    %38 = arith.addf %35, %37 : vector<8x128xf32>
    %c0_22 = arith.constant 0 : index
    %c0_23 = arith.constant 0 : index
    %39 = vector.load %arg8[%c0_22, %c0_23] : memref<3x128xf32, #tpu.memory_space<vmem>>, vector<3x128xf32>
    %40 = vector.extract_strided_slice %39 {offsets = [1, 0], sizes = [1, 128], strides = [1, 1]} : vector<3x128xf32> to vector<1x128xf32>
    %41 = vector.extract_strided_slice %39 {offsets = [2, 0], sizes = [1, 128], strides = [1, 1]} : vector<3x128xf32> to vector<1x128xf32>
    %cst_24 = arith.constant dense<0.000000e+00> : vector<128xf32>
    %42 = vector.multi_reduction <add>, %38, %cst_24 [0] : vector<8x128xf32> to vector<128xf32>
    %43 = vector.shape_cast %42 : vector<128xf32> to vector<1x128xf32>
    %cst_25 = arith.constant 8.000000e+00 : f32
    %44 = vector.broadcast %cst_25 : f32 to vector<1x128xf32>
    %45 = arith.divf %43, %44 : vector<1x128xf32>
    %46 = vector.broadcast %45 : vector<1x128xf32> to vector<8x128xf32>
    %47 = arith.subf %38, %46 : vector<8x128xf32>
    %48 = arith.mulf %47, %47 : vector<8x128xf32>
    %cst_26 = arith.constant dense<0.000000e+00> : vector<128xf32>
    %49 = vector.multi_reduction <add>, %48, %cst_26 [0] : vector<8x128xf32> to vector<128xf32>
    %50 = vector.shape_cast %49 : vector<128xf32> to vector<1x128xf32>
    %cst_27 = arith.constant 8.000000e+00 : f32
    %51 = vector.broadcast %cst_27 : f32 to vector<1x128xf32>
    %52 = arith.divf %50, %51 : vector<1x128xf32>
    %cst_28 = arith.constant 1.000000e-03 : f32
    %53 = vector.broadcast %cst_28 : f32 to vector<1x128xf32>
    %54 = arith.addf %52, %53 : vector<1x128xf32>
    %55 = math.rsqrt %54 : vector<1x128xf32>
    %56 = arith.mulf %40, %55 : vector<1x128xf32>
    %57 = vector.broadcast %56 : vector<1x128xf32> to vector<8x128xf32>
    %58 = arith.mulf %47, %57 : vector<8x128xf32>
    %59 = vector.broadcast %41 : vector<1x128xf32> to vector<8x128xf32>
    %60 = arith.addf %58, %59 : vector<8x128xf32>
    %cst_29 = arith.constant 0.000000e+00 : f32
    %61 = vector.broadcast %cst_29 : f32 to vector<8x128xf32>
    %62 = arith.maximumf %60, %61 : vector<8x128xf32>
    %c0_30 = arith.constant 0 : index
    %c0_31 = arith.constant 0 : index
    %63 = vector.load %arg9[%c0_30, %c0_31] : memref<8x128xf32, #tpu.memory_space<vmem>>, vector<8x128xf32>
    tpu.vector_store %arg9[%c0_30, %c0_31], %62 {strides = array<i32>} : memref<8x128xf32, #tpu.memory_space<vmem>>, vector<8x128xf32>,
    return
  }
  func.func @transform_0(%arg0: i32) -> (i32, i32) {
    %c0_i32 = arith.constant 0 : i32
    %c0_i32_0 = arith.constant 0 : i32
    %c0_i32_1 = arith.constant 0 : i32
    return %c0_i32, %c0_i32_0 : i32, i32
  }
  func.func @transform_1(%arg0: i32) -> (i32, i32) {
    %c0_i32 = arith.constant 0 : i32
    %c0_i32_0 = arith.constant 0 : i32
    %c0_i32_1 = arith.constant 0 : i32
    return %c0_i32, %c0_i32_0 : i32, i32
  }
  func.func @transform_2(%arg0: i32) -> (i32, i32) {
    %c0_i32 = arith.constant 0 : i32
    %c0_i32_0 = arith.constant 0 : i32
    %c0_i32_1 = arith.constant 0 : i32
    return %c0_i32, %c0_i32_0 : i32, i32
  }
  func.func @transform_3(%arg0: i32) -> (i32, i32) {
    %c0_i32 = arith.constant 0 : i32
    %c0_i32_0 = arith.constant 0 : i32
    %c0_i32_1 = arith.constant 0 : i32
    return %c0_i32, %c0_i32_0 : i32, i32
  }
  func.func @transform_4(%arg0: i32) -> (i32, i32) {
    %c0_i32 = arith.constant 0 : i32
    %c0_i32_0 = arith.constant 0 : i32
    %c0_i32_1 = arith.constant 0 : i32
    return %c0_i32, %c0_i32_0 : i32, i32
  }
  func.func @transform_5(%arg0: i32) -> (i32, i32) {
    %c0_i32 = arith.constant 0 : i32
    %c0_i32_0 = arith.constant 0 : i32
    %c0_i32_1 = arith.constant 0 : i32
    return %c0_i32, %c0_i32_0 : i32, i32
  }
  func.func @transform_6(%arg0: i32) -> (i32, i32) {
    %c0_i32 = arith.constant 0 : i32
    %c0_i32_0 = arith.constant 0 : i32
    %c0_i32_1 = arith.constant 0 : i32
    return %c0_i32, %c0_i32_0 : i32, i32
  }
  func.func @transform_7(%arg0: i32) -> (i32, i32) {
    %c0_i32 = arith.constant 0 : i32
    %c0_i32_0 = arith.constant 0 : i32
    %c0_i32_1 = arith.constant 0 : i32
    return %c0_i32, %c0_i32_0 : i32, i32
  }
  func.func @transform_8(%arg0: i32) -> (i32, i32) {
    %c0_i32 = arith.constant 0 : i32
    %c0_i32_0 = arith.constant 0 : i32
    %c0_i32_1 = arith.constant 0 : i32
    return %c0_i32, %c0_i32_0 : i32, i32
  }
}

</mosaic_0001>

<llo_original>
// kernel: tpu_custom_call.1
$region0: #{tpu_custom_call.1}
  #allocation0 [shape = 'u32[]', space=smem, size = 0x4, offset = 0x4, fixed_abs, tag = 'smem constant byte address 0x4 - core index']
  #allocation1 [shape = 'u32[144,128]{1,0:T(1,128)}', space=vmem, size = 0x12000, scoped, tag = 'internal scratch']
  %s0 = inlined_call_operand.hbm [shape: f32[8,16], index: 0, kind: input, shape index: {}]
  %s1 = inlined_call_operand.hbm [shape: f32[8,5], index: 1, kind: input, shape index: {}]
  %s2 = inlined_call_operand.hbm [shape: bf16[16,128], index: 2, kind: input, shape index: {}]
  %s3 = inlined_call_operand.vmem [shape: bf16[5,128], index: 3, kind: input, shape index: {}]
  %s4 = inlined_call_operand.vmem [shape: f32[3,128], index: 4, kind: input, shape index: {}]
  %s5 = inlined_call_operand.hbm [shape: bf16[128,128], index: 5, kind: input, shape index: {}]
  %s6 = inlined_call_operand.vmem [shape: bf16[5,128], index: 6, kind: input, shape index: {}]
  %s7 = inlined_call_operand.vmem [shape: f32[3,128], index: 7, kind: input, shape index: {}]
  %s8 = inlined_call_operand.hbm [shape: f32[8,128], index: 8, kind: output, shape index: {}]
  %s9 = sld [smem:[#allocation0]]
  $region58: #{tpu_custom_call.1} parent=0
    _
  %s11 = ssub.s32 1, %s9
  %s12 = scalar_select 0, %s11, %s9
  $region1: #{tpu_custom_call.1} parent=0
    #allocation2 [shape = 'u8[4096]{0}', space=vmem, size = 0x1000, scoped, tag = 'input window, operand 0, single buffered']
    #allocation3 [shape = 's32[1]{0}', space=sflag, size = 0x4, scoped, tag = 'scoped memory for tpu_custom_call.1']
    #allocation4 [shape = 's32[1]{0}', space=sflag, size = 0x4, scoped, tag = 'scoped memory for tpu_custom_call.1']
    #allocation5 [shape = 'u8[4096]{0}', space=vmem, size = 0x1000, scoped, tag = 'input window, operand 1, single buffered']
    #allocation6 [shape = 's32[1]{0}', space=sflag, size = 0x4, scoped, tag = 'scoped memory for tpu_custom_call.1']
    #allocation7 [shape = 'u8[4096]{0}', space=vmem, size = 0x1000, scoped, tag = 'input window, operand 2, single buffered']
    #allocation8 [shape = 'u8[32768]{0}', space=vmem, size = 0x8000, scoped, tag = 'input window, operand 5, single buffered']
    #allocation9 [shape = 's32[1]{0}', space=sflag, size = 0x4, scoped, tag = 'scoped memory for tpu_custom_call.1']
    #allocation10 [shape = 'u8[4096]{0}', space=vmem, size = 0x1000, scoped, tag = 'output window, operand 0, single buffered']
    %13 = vsyncpa [#allocation3], 0
    %14 = vsyncpa [#allocation6], 0
    %15 = vsyncpa [#allocation9], 0
    %16 = vsyncpa [#allocation4], 0
    // Predicated region
    $region2: #{tpu_custom_call.1} parent=1 // pred_check
      _
    $region3: #{tpu_custom_call.1} parent=1 // pred_check_branch
      %18 = sbr.rel (0) target = $region5
    $region4: #{tpu_custom_call.1} parent=1 // pred_region
      %s20 = ssub.s32 128, 128
      %21 = vsyncadd [#allocation3], %s20
      %s23 = sshll.u32 [#allocation2], 4
      %s24 = int_to_ptr.vmem [resolvable:$true] %s23
      %26 = dma.hbm_to_vmem [thread:$0]  %s0, 128, %s24, [#allocation3]
    $region5: #{tpu_custom_call.1} parent=1 // pred_fallthru
      _
    // Predicated region
    $region6: #{tpu_custom_call.1} parent=1 // pred_check
      _
    $region7: #{tpu_custom_call.1} parent=1 // pred_check_branch
      %28 = sbr.rel (0) target = $region9
    $region8: #{tpu_custom_call.1} parent=1 // pred_region
      %s30 = ssub.s32 128, 128
      %31 = vsyncadd [#allocation6], %s30
      %s33 = sshll.u32 [#allocation5], 4
      %s34 = int_to_ptr.vmem [resolvable:$true] %s33
      %36 = dma.hbm_to_vmem [thread:$0]  %s1, 128, %s34, [#allocation6]
    $region9: #{tpu_custom_call.1} parent=1 // pred_fallthru
      _
    // Predicated region
    $region10: #{tpu_custom_call.1} parent=1 // pred_check
      _
    $region11: #{tpu_custom_call.1} parent=1 // pred_check_branch
      %38 = sbr.rel (0) target = $region13
    $region12: #{tpu_custom_call.1} parent=1 // pred_region
      %s40 = ssub.s32 128, 128
      %41 = vsyncadd [#allocation6], %s40
      %s42 = sshll.u32 [#allocation7], 4
      %s43 = int_to_ptr.vmem [resolvable:$true] %s42
      %48 = dma.hbm_to_vmem [thread:$0]  %s2, 128, %s43, [#allocation6], 64, 64, 4
    $region13: #{tpu_custom_call.1} parent=1 // pred_fallthru
      _
    // Predicated region
    $region14: #{tpu_custom_call.1} parent=1 // pred_check
      _
    $region15: #{tpu_custom_call.1} parent=1 // pred_check_branch
      %50 = sbr.rel (0) target = $region17
    $region16: #{tpu_custom_call.1} parent=1 // pred_region
      _
    $region17: #{tpu_custom_call.1} parent=1 // pred_fallthru
      _
    // Predicated region
    $region18: #{tpu_custom_call.1} parent=1 // pred_check
      _
    $region19: #{tpu_custom_call.1} parent=1 // pred_check_branch
      %52 = sbr.rel (0) target = $region21
    $region20: #{tpu_custom_call.1} parent=1 // pred_region
      _
    $region21: #{tpu_custom_call.1} parent=1 // pred_fallthru
      _
    // Predicated region
    $region22: #{tpu_custom_call.1} parent=1 // pred_check
      _
    $region23: #{tpu_custom_call.1} parent=1 // pred_check_branch
      %54 = sbr.rel (0) target = $region25
    $region24: #{tpu_custom_call.1} parent=1 // pred_region
      %s56 = ssub.s32 1024, 1024
      %57 = vsyncadd [#allocation9], %s56
      %s58 = sshll.u32 [#allocation8], 4
      %s59 = int_to_ptr.vmem [resolvable:$true] %s58
      %64 = dma.hbm_to_vmem [thread:$0]  %s5, 1024, %s59, [#allocation9], 64, 64, 4
    $region25: #{tpu_custom_call.1} parent=1 // pred_fallthru
      _
    // Predicated region
    $region26: #{tpu_custom_call.1} parent=1 // pred_check
      _
    $region27: #{tpu_custom_call.1} parent=1 // pred_check_branch
      %66 = sbr.rel (0) target = $region29
    $region28: #{tpu_custom_call.1} parent=1 // pred_region
      _
    $region29: #{tpu_custom_call.1} parent=1 // pred_fallthru
      _
    // Predicated region
    $region30: #{tpu_custom_call.1} parent=1 // pred_check
      _
    $region31: #{tpu_custom_call.1} parent=1 // pred_check_branch
      %68 = sbr.rel (0) target = $region33
    $region32: #{tpu_custom_call.1} parent=1 // pred_region
      _
    $region33: #{tpu_custom_call.1} parent=1 // pred_fallthru
      _
    // Predicated region
    $region34: #{tpu_custom_call.1} parent=1 // pred_check
      _
    $region35: #{tpu_custom_call.1} parent=1 // pred_check_branch
      %70 = sbr.rel (0) target = $region37
    $region36: #{tpu_custom_call.1} parent=1 // pred_region
      %71 = dma.done [#allocation3], 128
    $region37: #{tpu_custom_call.1} parent=1 // pred_fallthru
      _
    // Predicated region
    $region38: #{tpu_custom_call.1} parent=1 // pred_check
      _
    $region39: #{tpu_custom_call.1} parent=1 // pred_check_branch
      %73 = sbr.rel (0) target = $region41
    $region40: #{tpu_custom_call.1} parent=1 // pred_region
      %74 = dma.done [#allocation6], 128
    $region41: #{tpu_custom_call.1} parent=1 // pred_fallthru
      _
    // Predicated region
    $region42: #{tpu_custom_call.1} parent=1 // pred_check
      _
    $region43: #{tpu_custom_call.1} parent=1 // pred_check_branch
      %76 = sbr.rel (0) target = $region45
    $region44: #{tpu_custom_call.1} parent=1 // pred_region
      %77 = dma.done [#allocation6], 128
    $region45: #{tpu_custom_call.1} parent=1 // pred_fallthru
      _
    // Predicated region
    $region46: #{tpu_custom_call.1} parent=1 // pred_check
      _
    $region47: #{tpu_custom_call.1} parent=1 // pred_check_branch
      %79 = sbr.rel (0) target = $region49
    $region48: #{tpu_custom_call.1} parent=1 // pred_region
      %80 = dma.done [#allocation9], 1024
    $region49: #{tpu_custom_call.1} parent=1 // pred_fallthru
      _
    %v82 = vld [vmem:[#allocation5] sm:$0xff]
    %v83 = vpack.c.bf16 %v82, %v82
    %v84 = vld [vmem:[#allocation2] sm:$0xff]
    %v85 = vpack.c.bf16 %v84, %v84
    %v86 = vld [vmem:[#allocation7] sm:$0xf]
    %v87 = vld [vmem:[#allocation7 + $0x4] sm:$0xf]
    %v88 = vld [vmem:[%s3] sm:$0x7]
    %vm89 = vcmask 39936
    %v91 = vsel %vm89, %v83, 0
    %vm93 = vcmask 1041408
    %vm94 = vcmask 1042432
    %v95 = vsel %vm93, 4294967295, 65535
    %v96 = vsel %vm94, %v95, 0
    %v98 = vand.u32 %v88, %v96
    %100 = vmatprep.subr.bf16.mxu0 0
    %101 = vmatpush1.bf16.msra.mxu0 %v98
    %102 = vmatprep.subr.bf16.mxu0 0
    %103 = vmatpush1.bf16.msra.mxu0 0
    %104 = vmatprep.subr.bf16.mxu0 0
    %105 = vmatpush1.bf16.msra.mxu0 0
    %106 = vmatprep.subr.bf16.mxu0 0
    %107 = vmatpush1.bf16.msra.mxu0 0
    %108 = vmatprep.subr.bf16.mxu0 0
    %109 = vmatpush1.bf16.msra.mxu0 0
    %110 = vmatprep.subr.bf16.mxu0 0
    %111 = vmatpush1.bf16.msra.mxu0 0
    %112 = vmatprep.subr.bf16.mxu0 0
    %113 = vmatpush1.bf16.msra.mxu0 0
    %114 = vmatprep.subr.bf16.mxu0 0
    %115 = vmatpush1.bf16.msra.mxu0 0
    %116 = vmatprep.subr.bf16.mxu0 0
    %117 = vmatpush1.bf16.msra.mxu0 0
    %118 = vmatprep.subr.bf16.mxu0 0
    %119 = vmatpush1.bf16.msra.mxu0 0
    %120 = vmatprep.subr.bf16.mxu0 0
    %121 = vmatpush1.bf16.msra.mxu0 0
    %122 = vmatprep.subr.bf16.mxu0 0
    %123 = vmatpush1.bf16.msra.mxu0 0
    %124 = vmatprep.subr.bf16.mxu0 0
    %125 = vmatpush1.bf16.msra.mxu0 0
    %126 = vmatprep.subr.bf16.mxu0 0
    %127 = vmatpush1.bf16.msra.mxu0 0
    %128 = vmatprep.subr.bf16.mxu0 0
    %129 = vmatpush1.bf16.msra.mxu0 0
    %130 = vmatprep.subr.bf16.mxu0 0
    %131 = vmatpush1.bf16.msra.mxu0 0
    %132 = vmatprep.mubr.bf16.mxu0 0
    %133 = vmatmul.mubr.bf16.gmra.mrb[0].mxu0 %v91
    %v134 = vpop.f32.mrb[0].mxu0
    %v135 = vadd.f32 0.0, %v134
    %v136 = vpop.f32.mrb[0].mxu0
    %v137 = vpop.f32.mrb[0].mxu0
    %v138 = vpop.f32.mrb[0].mxu0
    %139 = vdwg.mxu0
    %v142 = vunpack.c.l.b16 %v86
    %v143 = vunpack.c.l.b16 %v87
    %v144 = vpack.c.b16 %v143, %v142
    %vm146 = vcmask 130048
    %v148 = vsel %vm146, %v85, 0
    %150 = vmatprep.subr.bf16.mxu0 0
    %151 = vmatpush1.bf16.msra.mxu0 %v144
    %152 = vmatprep.subr.bf16.mxu0 0
    %153 = vmatpush1.bf16.msra.mxu0 0
    %154 = vmatprep.subr.bf16.mxu0 0
    %155 = vmatpush1.bf16.msra.mxu0 0
    %156 = vmatprep.subr.bf16.mxu0 0
    %157 = vmatpush1.bf16.msra.mxu0 0
    %158 = vmatprep.subr.bf16.mxu0 0
    %159 = vmatpush1.bf16.msra.mxu0 0
    %160 = vmatprep.subr.bf16.mxu0 0
    %161 = vmatpush1.bf16.msra.mxu0 0
    %162 = vmatprep.subr.bf16.mxu0 0
    %163 = vmatpush1.bf16.msra.mxu0 0
    %164 = vmatprep.subr.bf16.mxu0 0
    %165 = vmatpush1.bf16.msra.mxu0 0
    %166 = vmatprep.subr.bf16.mxu0 0
    %167 = vmatpush1.bf16.msra.mxu0 0
    %168 = vmatprep.subr.bf16.mxu0 0
    %169 = vmatpush1.bf16.msra.mxu0 0
    %170 = vmatprep.subr.bf16.mxu0 0
    %171 = vmatpush1.bf16.msra.mxu0 0
    %172 = vmatprep.subr.bf16.mxu0 0
    %173 = vmatpush1.bf16.msra.mxu0 0
    %174 = vmatprep.subr.bf16.mxu0 0
    %175 = vmatpush1.bf16.msra.mxu0 0
    %176 = vmatprep.subr.bf16.mxu0 0
    %177 = vmatpush1.bf16.msra.mxu0 0
    %178 = vmatprep.subr.bf16.mxu0 0
    %179 = vmatpush1.bf16.msra.mxu0 0
    %180 = vmatprep.subr.bf16.mxu0 0
    %181 = vmatpush1.bf16.msra.mxu0 0
    %182 = vmatprep.mubr.bf16.mxu0 0
    %183 = vmatmul.mubr.bf16.gmra.mrb[0].mxu0 %v148
    %v184 = vpop.f32.mrb[0].mxu0
    %v185 = vadd.f32 %v135, %v184
    %v186 = vpop.f32.mrb[0].mxu0
    %v187 = vpop.f32.mrb[0].mxu0
    %v188 = vpop.f32.mrb[0].mxu0
    %189 = vdwg.mxu0
    %v190 = vld [vmem:[%s4] sm:$0x7]
    %v191 = vrot.slane %v185, 4
    %v192 = vadd.f32 %v185, %v191
    %v193 = vrot.slane %v192, 2
    %v194 = vadd.f32 %v192, %v193
    %v195 = vrot.slane %v194, 1
    %v196 = vadd.f32 %v194, %v195
    %v197 = vrcp.pop 8.0
    %v198 = vmul.f32 %v196, %v197
    %v199 = vsub.f32 %v185, %v198
    %v200 = vmul.f32 %v199, %v199
    %v201 = vrot.slane %v200, 4
    %v202 = vadd.f32 %v200, %v201
    %v203 = vrot.slane %v202, 2
    %v204 = vadd.f32 %v202, %v203
    %v205 = vrot.slane %v204, 1
    %v206 = vadd.f32 %v204, %v205
    %v207 = vmul.f32 %v206, %v197
    %v208 = vadd.f32 %v207, 0.001
    %v209 = vrsqrt.pop %v208
    %v210 = vmul.f32 %v190, %v209
    %v211 = vlaneseq
    %v212 = vshrl.u32 %v211, 7
    %v213 = vsub.s32 1, %v212
    %v214 = vrot.slane %v210, %v213
    %v215 = vmul.f32 %v199, %v214
    %v216 = vlaneseq
    %v217 = vshrl.u32 %v216, 7
    %v218 = vsub.s32 2, %v217
    %v219 = vrot.slane %v190, %v218
    %v220 = vadd.f32 %v215, %v219
    %v221 = vmax.f32 %v220, 0.0
    %v222 = vpack.c.bf16 %v221, %v221
    %v223 = vld [vmem:[#allocation8] sm:$0xf]
    %v224 = vld [vmem:[#allocation8 + $0x4] sm:$0xf]
    %v225 = vld [vmem:[#allocation8 + $0x8] sm:$0xf]
    %v226 = vld [vmem:[#allocation8 + $0xc] sm:$0xf]
    %v227 = vld [vmem:[#allocation8 + $0x10] sm:$0xf]
    %v228 = vld [vmem:[#allocation8 + $0x14] sm:$0xf]
    %v229 = vld [vmem:[#allocation8 + $0x18] sm:$0xf]
    %v230 = vld [vmem:[#allocation8 + $0x1c] sm:$0xf]
    %v231 = vld [vmem:[#allocation8 + $0x20] sm:$0xf]
    %v232 = vld [vmem:[#allocation8 + $0x24] sm:$0xf]
    %v233 = vld [vmem:[#allocation8 + $0x28] sm:$0xf]
    %v234 = vld [vmem:[#allocation8 + $0x2c] sm:$0xf]
    %v235 = vld [vmem:[#allocation8 + $0x30] sm:$0xf]
    %v236 = vld [vmem:[#allocation8 + $0x34] sm:$0xf]
    %v237 = vld [vmem:[#allocation8 + $0x38] sm:$0xf]
    %v238 = vld [vmem:[#allocation8 + $0x3c] sm:$0xf]
    %v239 = vld [vmem:[%s6] sm:$0x7]
    %v241 = vand.u32 %v239, %v96
    %243 = vmatprep.subr.bf16.mxu0 0
    %244 = vmatpush1.bf16.msra.mxu0 %v241
    %245 = vmatprep.subr.bf16.mxu0 0
    %246 = vmatpush1.bf16.msra.mxu0 0
    %247 = vmatprep.subr.bf16.mxu0 0
    %248 = vmatpush1.bf16.msra.mxu0 0
    %249 = vmatprep.subr.bf16.mxu0 0
    %250 = vmatpush1.bf16.msra.mxu0 0
    %251 = vmatprep.subr.bf16.mxu0 0
    %252 = vmatpush1.bf16.msra.mxu0 0
    %253 = vmatprep.subr.bf16.mxu0 0
    %254 = vmatpush1.bf16.msra.mxu0 0
    %255 = vmatprep.subr.bf16.mxu0 0
    %256 = vmatpush1.bf16.msra.mxu0 0
    %257 = vmatprep.subr.bf16.mxu0 0
    %258 = vmatpush1.bf16.msra.mxu0 0
    %259 = vmatprep.subr.bf16.mxu0 0
    %260 = vmatpush1.bf16.msra.mxu0 0
    %261 = vmatprep.subr.bf16.mxu0 0
    %262 = vmatpush1.bf16.msra.mxu0 0
    %263 = vmatprep.subr.bf16.mxu0 0
    %264 = vmatpush1.bf16.msra.mxu0 0
    %265 = vmatprep.subr.bf16.mxu0 0
    %266 = vmatpush1.bf16.msra.mxu0 0
    %267 = vmatprep.subr.bf16.mxu0 0
    %268 = vmatpush1.bf16.msra.mxu0 0
    %269 = vmatprep.subr.bf16.mxu0 0
    %270 = vmatpush1.bf16.msra.mxu0 0
    %271 = vmatprep.subr.bf16.mxu0 0
    %272 = vmatpush1.bf16.msra.mxu0 0
    %273 = vmatprep.subr.bf16.mxu0 0
    %274 = vmatpush1.bf16.msra.mxu0 0
    %275 = vmatprep.mubr.bf16.mxu0 0
    %276 = vmatmul.mubr.bf16.gmra.mrb[0].mxu0 %v91
    %v277 = vpop.f32.mrb[0].mxu0
    %v278 = vadd.f32 0.0, %v277
    %v279 = vpop.f32.mrb[0].mxu0
    %v280 = vpop.f32.mrb[0].mxu0
    %v281 = vpop.f32.mrb[0].mxu0
    %282 = vdwg.mxu0
    %v299 = vunpack.c.l.b16 %v223
    %v300 = vunpack.c.l.b16 %v224
    %v301 = vunpack.c.l.b16 %v225
    %v302 = vunpack.c.l.b16 %v226
    %v303 = vunpack.c.l.b16 %v227
    %v304 = vunpack.c.l.b16 %v228
    %v305 = vunpack.c.l.b16 %v229
    %v306 = vunpack.c.l.b16 %v230
    %v307 = vunpack.c.l.b16 %v231
    %v308 = vunpack.c.l.b16 %v232
    %v309 = vunpack.c.l.b16 %v233
    %v310 = vunpack.c.l.b16 %v234
    %v311 = vunpack.c.l.b16 %v235
    %v312 = vunpack.c.l.b16 %v236
    %v313 = vunpack.c.l.b16 %v237
    %v314 = vunpack.c.l.b16 %v238
    %v315 = vpack.c.b16 %v300, %v299
    %v316 = vpack.c.b16 %v302, %v301
    %v317 = vpack.c.b16 %v304, %v303
    %v318 = vpack.c.b16 %v306, %v305
    %v319 = vpack.c.b16 %v308, %v307
    %v320 = vpack.c.b16 %v310, %v309
    %v321 = vpack.c.b16 %v312, %v311
    %v322 = vpack.c.b16 %v314, %v313
    %331 = vmatprep.subr.bf16.mxu0 0
    %332 = vmatpush1.bf16.msra.mxu0 %v315
    %333 = vmatprep.subr.bf16.mxu0 0
    %334 = vmatpush1.bf16.msra.mxu0 %v316
    %335 = vmatprep.subr.bf16.mxu0 0
    %336 = vmatpush1.bf16.msra.mxu0 %v317
    %337 = vmatprep.subr.bf16.mxu0 0
    %338 = vmatpush1.bf16.msra.mxu0 %v318
    %339 = vmatprep.subr.bf16.mxu0 0
    %340 = vmatpush1.bf16.msra.mxu0 %v319
    %341 = vmatprep.subr.bf16.mxu0 0
    %342 = vmatpush1.bf16.msra.mxu0 %v320
    %343 = vmatprep.subr.bf16.mxu0 0
    %344 = vmatpush1.bf16.msra.mxu0 %v321
    %345 = vmatprep.subr.bf16.mxu0 0
    %346 = vmatpush1.bf16.msra.mxu0 %v322
    %347 = vmatprep.subr.bf16.mxu0 0
    %348 = vmatpush1.bf16.msra.mxu0 0
    %349 = vmatprep.subr.bf16.mxu0 0
    %350 = vmatpush1.bf16.msra.mxu0 0
    %351 = vmatprep.subr.bf16.mxu0 0
    %352 = vmatpush1.bf16.msra.mxu0 0
    %353 = vmatprep.subr.bf16.mxu0 0
    %354 = vmatpush1.bf16.msra.mxu0 0
    %355 = vmatprep.subr.bf16.mxu0 0
    %356 = vmatpush1.bf16.msra.mxu0 0
    %357 = vmatprep.subr.bf16.mxu0 0
    %358 = vmatpush1.bf16.msra.mxu0 0
    %359 = vmatprep.subr.bf16.mxu0 0
    %360 = vmatpush1.bf16.msra.mxu0 0
    %361 = vmatprep.subr.bf16.mxu0 0
    %362 = vmatpush1.bf16.msra.mxu0 0
    %363 = vmatprep.mubr.bf16.mxu0 0
    %364 = vmatmul.mubr.bf16.gmra.mrb[0].mxu0 %v222
    %v365 = vpop.f32.mrb[0].mxu0
    %v366 = vadd.f32 %v278, %v365
    %v367 = vpop.f32.mrb[0].mxu0
    %v368 = vpop.f32.mrb[0].mxu0
    %v369 = vpop.f32.mrb[0].mxu0
    %370 = vdwg.mxu0
    %v371 = vld [vmem:[%s7] sm:$0x7]
    %v372 = vrot.slane %v366, 4
    %v373 = vadd.f32 %v366, %v372
    %v374 = vrot.slane %v373, 2
    %v375 = vadd.f32 %v373, %v374
    %v376 = vrot.slane %v375, 1
    %v377 = vadd.f32 %v375, %v376
    %v378 = vmul.f32 %v377, %v197
    %v379 = vsub.f32 %v366, %v378
    %v380 = vmul.f32 %v379, %v379
    %v381 = vrot.slane %v380, 4
    %v382 = vadd.f32 %v380, %v381
    %v383 = vrot.slane %v382, 2
    %v384 = vadd.f32 %v382, %v383
    %v385 = vrot.slane %v384, 1
    %v386 = vadd.f32 %v384, %v385
    %v387 = vmul.f32 %v386, %v197
    %v388 = vadd.f32 %v387, 0.001
    %v389 = vrsqrt.pop %v388
    %v390 = vmul.f32 %v371, %v389
    %v391 = vlaneseq
    %v392 = vshrl.u32 %v391, 7
    %v393 = vsub.s32 1, %v392
    %v394 = vrot.slane %v390, %v393
    %v395 = vmul.f32 %v379, %v394
    %v396 = vlaneseq
    %v397 = vshrl.u32 %v396, 7
    %v398 = vsub.s32 2, %v397
    %v399 = vrot.slane %v371, %v398
    %v400 = vadd.f32 %v395, %v399
    %v401 = vmax.f32 %v400, 0.0
    %402 = vst [vmem:[#allocation10] sm:$0xff] %v401
    // Predicated region
    $region50: #{tpu_custom_call.1} parent=1 // pred_check
      _
    $region51: #{tpu_custom_call.1} parent=1 // pred_check_branch
      %404 = sbr.rel (0) target = $region53
    $region52: #{tpu_custom_call.1} parent=1 // pred_region
      %s406 = ssub.s32 128, 128
      %407 = vsyncadd [#allocation4], %s406
      %s409 = sshll.u32 [#allocation10], 4
      %s410 = int_to_ptr.vmem [resolvable:$true] %s409
      %412 = dma.vmem_to_hbm [thread:$0]  %s410, 128, %s8, [#allocation4]
    $region53: #{tpu_custom_call.1} parent=1 // pred_fallthru
      _
    // Predicated region
    $region54: #{tpu_custom_call.1} parent=1 // pred_check
      _
    $region55: #{tpu_custom_call.1} parent=1 // pred_check_branch
      %414 = sbr.rel (0) target = $region57
    $region56: #{tpu_custom_call.1} parent=1 // pred_region
      %415 = dma.done [#allocation4], 128
    $region57: #{tpu_custom_call.1} parent=1 // pred_fallthru
      _
    %416 = vsyncpa [#allocation3], 1
    %417 = vsyncpa [#allocation6], 1
    %418 = vsyncpa [#allocation9], 1
    %419 = vsyncpa [#allocation4], 1

</llo_original>
